<compile_context>
chip_gen: v6e
topology: v6e:2x2x1
jax: 0.10.0
libtpu: 0.0.40
codegen_flags: <defaults>
</compile_context>

<pallas_src>
import jax
import jax.numpy as jnp
from jax.experimental import pallas as pl
from jax.experimental.pallas import tpu as pltpu

LRELU_SLOPE = 0.2
BN_EPS = 1e-5


def _embed_kernel(patches_ref, w_ref, shift_ref, pos_ref, o_ref):
    # (TP, K_pad)[bf16] @ (K_pad, N)[bf16] on the MXU, f32 accumulation.
    y = jnp.dot(patches_ref[0], w_ref[...], preferred_element_type=jnp.float32)
    # conv bias + BatchNorm(inference) folded into one per-channel shift
    # (per-channel scale is folded into the weight matrix in make_embedding_params).
    y = y + shift_ref[...]
    # LeakyReLU(0.2)
    y = jnp.where(y >= 0, y, LRELU_SLOPE * y)
    # + position embeddings (shared across batch; block index depends only on the
    #   patch-tile grid axis -> with batch innermost the tile is NOT re-fetched).
    y = y + pos_ref[...]
    # Dropout(0.1) -> identity in eval mode.
    o_ref[0] = y.astype(o_ref.dtype)


def _pick_patch_tile(n_patches, per_row_bytes, resident_bytes,
                     target=512, vmem_budget=24 << 20):
    """Largest multiple-of-8 divisor of n_patches that fits `target` and VMEM budget."""
    cap = max(8, (vmem_budget - resident_bytes) // max(per_row_bytes, 1))
    limit = int(min(target, cap, n_patches))
    best = None
    for t in range(8, limit + 1, 8):
        if n_patches % t == 0:
            best = t
    return best if best is not None else n_patches  # full-dim block fallback


def make_embedding_params(conv_w, conv_b, bn_gamma, bn_beta, bn_mean, bn_var,
                          pos_emb, compute_dtype=jnp.bfloat16):
    """Fold Conv2d bias + BatchNorm(eval) into (weights, shift) once (inference constants)."""
    f32 = jnp.float32
    N = conv_w.shape[0]
    K = conv_w.shape[1] * conv_w.shape[2] * conv_w.shape[3]
    scale = bn_gamma.astype(f32) * jax.lax.rsqrt(bn_var.astype(f32) + BN_EPS)
    shift = (conv_b.astype(f32) - bn_mean.astype(f32)) * scale + bn_beta.astype(f32)
    w_mat = conv_w.reshape(N, K).T.astype(f32) * scale[None, :]        # (K, N)
    # Keep the MXU contraction lane-dense: zero-pad K up to a multiple of 128.
    K_pad = ((K + 127) // 128) * 128
    if K_pad != K:
        w_mat = jnp.pad(w_mat, ((0, K_pad - K), (0, 0)))
    return {
        "w": w_mat.astype(compute_dtype),                              # (K_pad, N)
        "shift": shift.reshape(1, N),                                  # (1, N) f32
        "pos": pos_emb.reshape(-1, N).astype(f32),                     # (n_patches, N) f32
    }


def embedding_forward(x, params, patch_size):
    """x: (B, C, H, W) NCHW.  params from make_embedding_params.  Returns (B, nH*nW, hidden)."""
    B, C, H, W = x.shape
    P = patch_size
    assert H % P == 0 and W % P == 0, "spatial dims must be divisible by patch_size"
    nH, nW = H // P, W // P
    n_patches = nH * nW
    K = C * P * P

    w = params["w"]
    shift = params["shift"]
    pos = params["pos"]
    K_pad, N = w.shape
    assert pos.shape[0] == n_patches
    compute_dtype = w.dtype
    in_bytes = jnp.dtype(compute_dtype).itemsize
    out_bytes = jnp.dtype(x.dtype).itemsize

    # --- wrapper glue --------------------------------------------------------
    # Patchify (== Conv2d with kernel=stride=P, pad=0 as a GEMM), fused with the
    # bf16 cast (and K pad when needed) so the extra HBM pass is half-width.
    # TODO(synk): patch extraction still materializes one XLA copy in HBM; moving
    # it in-kernel needs strided manual DMA (memory_space=pl.ANY + make_async_copy).
    patches = (x.reshape(B, C, nH, P, nW, P)
                 .transpose(0, 2, 4, 1, 3, 5)
                 .reshape(B, n_patches, K))
    if K_pad != K:
        patches = jnp.pad(patches, ((0, 0), (0, 0), (0, K_pad - K)))
    patches = patches.astype(compute_dtype)

    # VMEM accounting (default double-buffering on every operand):
    per_row = 2 * (K_pad * in_bytes + N * 4 + N * out_bytes)   # patches + pos + out, per patch row
    resident = 2 * (K_pad * N * in_bytes) + 2 * (2 * N * 4)    # weights + shift
    TP = _pick_patch_tile(n_patches, per_row, resident)
    est = TP * per_row + resident + (1 << 20)
    vmem_limit = int(min(max(2 * est, 16 << 20), 40 << 20))    # raise v5e's 16 MiB default; stay under v7x's 64 MiB

    # Batch innermost -> pos / weight / shift block indices constant across the
    # inner loop (no per-batch re-DMA).  Both axes are independent ("parallel").
    grid = (n_patches // TP, B)

    out = pl.pallas_call(
        _embed_kernel,
        out_shape=jax.ShapeDtypeStruct((B, n_patches, N), x.dtype),
        grid=grid,
        in_specs=[
            pl.BlockSpec((1, TP, K_pad), lambda p, b: (b, p, 0)),   # patch tile (bf16)
            pl.BlockSpec((K_pad, N), lambda p, b: (0, 0)),          # folded weights (grid-invariant)
            pl.BlockSpec((1, N), lambda p, b: (0, 0)),              # per-channel shift (f32)
            pl.BlockSpec((TP, N), lambda p, b: (p, 0)),             # pos-emb (ignores batch index)
        ],
        out_specs=pl.BlockSpec((1, TP, N), lambda p, b: (b, p, 0)), # unpadded channel dim
        compiler_params=pltpu.CompilerParams(
            dimension_semantics=("parallel", "parallel"),
            vmem_limit_bytes=vmem_limit),
    )(patches, w, shift, pos)
    return out


if __name__ == "__main__":
    # Small config consistent with the module:
    #   config.down_sample_list[-1] = 8 channels, hidden_size = 32, patch_size = 4
    #   input spatial 16x16 -> n_patches = 4*4 = 16
    B, C, H, W = 2, 8, 16, 16
    hidden = 32
    P = 4
    nH, nW = H // P, W // P
    n_patches = nH * nW

    key = jax.random.PRNGKey(0)
    k_x, k_w, k_b, k_g, k_be, k_m, k_v, k_p = jax.random.split(key, 8)

    x = jax.random.normal(k_x, (B, C, H, W), dtype=jnp.float32)
    conv_w = jax.random.normal(k_w, (hidden, C, P, P), dtype=jnp.float32) * 0.05
    conv_b = jax.random.normal(k_b, (hidden,), dtype=jnp.float32) * 0.05
    bn_gamma = 1.0 + 0.1 * jax.random.normal(k_g, (hidden,), dtype=jnp.float32)
    bn_beta = 0.1 * jax.random.normal(k_be, (hidden,), dtype=jnp.float32)
    bn_mean = 0.1 * jax.random.normal(k_m, (hidden,), dtype=jnp.float32)
    bn_var = jnp.abs(1.0 + 0.1 * jax.random.normal(k_v, (hidden,), dtype=jnp.float32))
    # nn.Parameter(torch.zeros(1, n_patches, hidden)) is zeros at init; use a small
    # non-zero tensor so the position-embedding add is exercised.
    pos_emb = 0.01 * jax.random.normal(k_p, (1, n_patches, hidden), dtype=jnp.float32)
    # TODO(synk): Dropout(0.1)/Dropout2d use torch RNG in train mode; implemented as eval-mode identity.

    params = make_embedding_params(conv_w, conv_b, bn_gamma, bn_beta, bn_mean,
                                   bn_var, pos_emb, compute_dtype=jnp.bfloat16)
    out = embedding_forward(x, params, patch_size=P)
    out = jax.block_until_ready(out)
    assert out.shape == (B, n_patches, hidden)

    # --- references ----------------------------------------------------------
    patches = (x.reshape(B, C, nH, P, nW, P).transpose(0, 2, 4, 1, 3, 5)
                 .reshape(B, n_patches, C * P * P))
    scale = bn_gamma * jax.lax.rsqrt(bn_var + BN_EPS)
    shift = (conv_b - bn_mean) * scale + bn_beta

    # (1) tight check against a reference using the SAME bf16 operand casting
    #     (validates the kernel math / fusion, independent of quantization choice)
    w_folded_bf16 = (conv_w.reshape(hidden, -1).T * scale[None, :]).astype(jnp.bfloat16)
    y = jnp.einsum("bpk,kn->bpn", patches.astype(jnp.bfloat16), w_folded_bf16,
                   preferred_element_type=jnp.float32)
    y = y + shift
    y = jnp.where(y >= 0, y, LRELU_SLOPE * y)
    ref_bf16 = y + pos_emb
    err = float(jnp.max(jnp.abs(out - ref_bf16)))
    assert jnp.allclose(out, ref_bf16, rtol=1e-3, atol=1e-3), err

    # (2) loose sanity check against the pure-f32 unfused reference
    yf = patches @ conv_w.reshape(hidden, -1).T + conv_b
    yf = (yf - bn_mean) * jax.lax.rsqrt(bn_var + BN_EPS) * bn_gamma + bn_beta
    yf = jnp.where(yf >= 0, yf, LRELU_SLOPE * yf)
    ref_f32 = yf + pos_emb
    errf = float(jnp.max(jnp.abs(out - ref_f32)))
    assert jnp.allclose(out, ref_f32, rtol=5e-2, atol=5e-2), errf

    print("KERNEL_OK")
</pallas_src>

<mosaic_0001>
module attributes {stable_mosaic.version = 11 : i64} {
  func.func @_embed_kernel(%arg0: i32, %arg1: i32, %arg2: memref<1x16x128xbf16, #tpu.memory_space<vmem>>, %arg3: memref<128x32xbf16, #tpu.memory_space<vmem>>, %arg4: memref<1x32xf32, #tpu.memory_space<vmem>>, %arg5: memref<16x32xf32, #tpu.memory_space<vmem>>, %arg6: memref<1x16x32xf32, #tpu.memory_space<vmem>>) attributes {dimension_semantics = [#tpu.dimension_semantics<parallel>, #tpu.dimension_semantics<parallel>], iteration_bounds = array<i64: 1, 2>, scalar_prefetch = 0 : i64, scratch_operands = 0 : i64, tpu.core_type = #tpu.core_type<tc>, window_params = [{transform_indices = @transform_0, window_bounds = array<i64: 1, 16, 128>}, {pipeline_mode = #tpu.pipeline_mode<synchronous>, transform_indices = @transform_1, window_bounds = array<i64: 128, 32>}, {pipeline_mode = #tpu.pipeline_mode<synchronous>, transform_indices = @transform_2, window_bounds = array<i64: 1, 32>}, {transform_indices = @transform_3, window_bounds = array<i64: 16, 32>}, {transform_indices = @transform_4, window_bounds = array<i64: 1, 16, 32>}]} {
    %c0 = arith.constant 0 : index
    %c0_0 = arith.constant 0 : index
    %c0_1 = arith.constant 0 : index
    %0 = vector.load %arg2[%c0, %c0_0, %c0_1] : memref<1x16x128xbf16, #tpu.memory_space<vmem>>, vector<1x16x128xbf16>
    %1 = vector.shape_cast %0 : vector<1x16x128xbf16> to vector<16x128xbf16>
    %c0_2 = arith.constant 0 : index
    %c0_3 = arith.constant 0 : index
    %2 = vector.load %arg3[%c0_2, %c0_3] : memref<128x32xbf16, #tpu.memory_space<vmem>>, vector<128x32xbf16>
    %cst = arith.constant dense<0.000000e+00> : vector<16x32xf32>
    %3 = tpu.matmul %1, %2, %cst {dimension_numbers = #tpu.dot_dimension_numbers<[1], [0], [0], [1], [0, 0, 1, 1], [], []>} : vector<16x128xbf16>, vector<128x32xbf16>, vector<16x32xf32> -> vector<16x32xf32>
    %c0_4 = arith.constant 0 : index
    %c0_5 = arith.constant 0 : index
    %4 = vector.load %arg4[%c0_4, %c0_5] : memref<1x32xf32, #tpu.memory_space<vmem>>, vector<1x32xf32>
    %5 = vector.broadcast %4 : vector<1x32xf32> to vector<16x32xf32>
    %6 = arith.addf %3, %5 : vector<16x32xf32>
    %cst_6 = arith.constant 0.000000e+00 : f32
    %7 = vector.broadcast %cst_6 : f32 to vector<16x32xf32>
    %8 = arith.cmpf oge, %6, %7 : vector<16x32xf32>
    %cst_7 = arith.constant 2.000000e-01 : f32
    %9 = vector.broadcast %cst_7 : f32 to vector<16x32xf32>
    %10 = arith.mulf %9, %6 : vector<16x32xf32>
    %11 = arith.select %8, %6, %10 : vector<16x32xi1>, vector<16x32xf32>
    %c0_8 = arith.constant 0 : index
    %c0_9 = arith.constant 0 : index
    %12 = vector.load %arg5[%c0_8, %c0_9] : memref<16x32xf32, #tpu.memory_space<vmem>>, vector<16x32xf32>
    %13 = arith.addf %11, %12 : vector<16x32xf32>
    %c0_10 = arith.constant 0 : index
    %c0_11 = arith.constant 0 : index
    %c0_12 = arith.constant 0 : index
    %14 = vector.load %arg6[%c0_10, %c0_11, %c0_12] : memref<1x16x32xf32, #tpu.memory_space<vmem>>, vector<1x16x32xf32>
    %15 = vector.shape_cast %14 : vector<1x16x32xf32> to vector<16x32xf32>
    %16 = vector.shape_cast %13 : vector<16x32xf32> to vector<1x16x32xf32>
    tpu.vector_store %arg6[%c0_10, %c0_11, %c0_12], %16 {strides = array<i32>} : memref<1x16x32xf32, #tpu.memory_space<vmem>>, vector<1x16x32xf32>,
    return
  }
  func.func @transform_0(%arg0: i32, %arg1: i32) -> (i32, i32, i32) {
    %c0_i32 = arith.constant 0 : i32
    %c0_i32_0 = arith.constant 0 : i32
    return %arg1, %arg0, %c0_i32 : i32, i32, i32
  }
  func.func @transform_1(%arg0: i32, %arg1: i32) -> (i32, i32) {
    %c0_i32 = arith.constant 0 : i32
    %c0_i32_0 = arith.constant 0 : i32
    %c0_i32_1 = arith.constant 0 : i32
    return %c0_i32, %c0_i32_0 : i32, i32
  }
  func.func @transform_2(%arg0: i32, %arg1: i32) -> (i32, i32) {
    %c0_i32 = arith.constant 0 : i32
    %c0_i32_0 = arith.constant 0 : i32
    %c0_i32_1 = arith.constant 0 : i32
    return %c0_i32, %c0_i32_0 : i32, i32
  }
  func.func @transform_3(%arg0: i32, %arg1: i32) -> (i32, i32) {
    %c0_i32 = arith.constant 0 : i32
    %c0_i32_0 = arith.constant 0 : i32
    return %arg0, %c0_i32 : i32, i32
  }
  func.func @transform_4(%arg0: i32, %arg1: i32) -> (i32, i32, i32) {
    %c0_i32 = arith.constant 0 : i32
    %c0_i32_0 = arith.constant 0 : i32
    return %arg1, %arg0, %c0_i32 : i32, i32, i32
  }
}

</mosaic_0001>

<llo_original>
// kernel: tpu_custom_call.1
$region0: #{tpu_custom_call.1}
  #allocation0 [shape = 'u32[]', space=smem, size = 0x4, offset = 0x4, fixed_abs, tag = 'smem constant byte address 0x4 - core index']
  #allocation1 [shape = 'u32[144,128]{1,0:T(1,128)}', space=vmem, size = 0x12000, scoped, tag = 'internal scratch']
  %s0 = inlined_call_operand.vmem [shape: bf16[2,16,128], index: 0, kind: input, shape index: {}]
  %s1 = inlined_call_operand.vmem [shape: bf16[128,32], index: 1, kind: input, shape index: {}]
  %s2 = inlined_call_operand.vmem [shape: f32[1,32], index: 2, kind: input, shape index: {}]
  %s3 = inlined_call_operand.vmem [shape: f32[16,32], index: 3, kind: input, shape index: {}]
  %s4 = inlined_call_operand.hbm [shape: f32[2,16,32], index: 4, kind: output, shape index: {}]
  %s5 = sld [smem:[#allocation0]]
  $region49: #{tpu_custom_call.1} parent=0
    _
  %s7 = ssub.s32 1, %s5
  %s8 = scalar_select 0, %s7, %s5
  $region1: #{tpu_custom_call.1} parent=0
    #allocation2 [shape = 'u8[16384]{0}', space=vmem, size = 0x4000, scoped, tag = 'output window, operand 0']
    #allocation3 [shape = 's32[2]{0}', space=sflag, size = 0x8, scoped, tag = 'scoped memory for tpu_custom_call.1']
    %9 = vsyncpa [#allocation3], 0
    %s10 = scalar_lea.sflag [#allocation3], 1
    %11 = vsyncpa %s10, 0
    loop: start=0, step=1, limit=4
    $region2: #{tpu_custom_call.1} parent=1 // loop_pre_header
      _
    $region3: #{tpu_custom_call.1} parent=1 // loop_header
      %s13 = sphi 0, %s17
      %p14 = scmp.ge.s32.totalorder %s13, 4
      %s20 = sphi 0, %s32
      %s21 = sphi 0, %s28
      %s22 = sphi 0, %s20
      %s23 = sphi 0, %s21
      %s24 = sphi 0, %s22
      %s25 = sphi 0, %s23
      %s37 = sphi 0, %s39
      %s40 = sphi 0, %s37
      %s41 = sphi 0, %s40
      %s57 = sphi 0, %s41
      %s61 = sphi 0, %s61
      %s63 = sphi 0, %s61
      %s64 = sphi 0, %s63
      %s78 = sphi 0, %s64
      %s82 = sphi 0, %s82
      %s84 = sphi 0, %s82
      %s85 = sphi 0, %s84
      %s99 = sphi 0, %s85
      %s105 = sphi 0, %s107
      %s108 = sphi 0, %s105
      %s109 = sphi 0, %s108
      %s125 = sphi 0, %s109
      %s133 = sphi 0, %s135
      %s136 = sphi 0, %s133
      %s137 = sphi 0, %s136
      %s153 = sphi 0, %s137
    $region4: #{tpu_custom_call.1} parent=1 // loop_header_branch
      %16 = sbr.rel (%p14) target = $region8
    $region5: #{tpu_custom_call.1} parent=1 // loop_body
      %s18 = ssub.s32 %s13, 1
      %s19 = ssub.s32 %s13, 2
      %s26 = sadd.s32 1, %s21
      %p27 = scmp.ge.s32.totalorder %s26, 2
      %s28 = scalar_select %p27, 0, %s26
      %s29 = sadd.s32 1, %s20
      %s30 = scalar_select %p27, %s29, %s20
      %p31 = scmp.ge.s32.totalorder %s30, 1
      %s32 = scalar_select %p31, 0, %s30
      %s33 = ssub.s32 %s21, %s28
      %s34 = ssub.s32 %s20, %s32
      %s35 = sor.u32 %s33, %s34
      %p36 = scmp.eq.s32.totalorder %s35, 0
      %s38 = sadd.s32 %s37, 1
      %s39 = scalar_select %p36, %s37, %s38
      %p42 = pneg %p36
      %p43 = scmp.eq.s32.totalorder %s13, 1
      %p44 = por %p42, %p43
      %p45 = scmp.ne.s32.totalorder %s37, %s40
      %p46 = scmp.eq.s32.totalorder %s13, 0
      %p47 = por %p45, %p46
      %p48 = scmp.ne.s32.totalorder %s37, %s40
      %p49 = scmp.eq.s32.totalorder %s18, 1
      %p50 = por %p48, %p49
      %p51 = scmp.ne.s32.totalorder %s40, %s41
      %p52 = scmp.eq.s32.totalorder %s18, 0
      %p53 = por %p51, %p52
      %p54 = scmp.ne.s32.totalorder %s40, %s41
      %p55 = scmp.eq.s32.totalorder %s19, 1
      %p56 = por %p54, %p55
      %p58 = scmp.ne.s32.totalorder %s41, %s57
      %p59 = scmp.eq.s32.totalorder %s19, 0
      %p60 = por %p58, %p59
      %s62 = sadd.s32 %s61, 1
      %p65 = scmp.eq.s32.totalorder %s13, 1
      %p66 = scmp.ne.s32.totalorder %s61, %s63
      %p67 = scmp.eq.s32.totalorder %s13, 0
      %p68 = por %p66, %p67
      %p69 = scmp.ne.s32.totalorder %s61, %s63
      %p70 = scmp.eq.s32.totalorder %s18, 1
      %p71 = por %p69, %p70
      %p72 = scmp.ne.s32.totalorder %s63, %s64
      %p73 = scmp.eq.s32.totalorder %s18, 0
      %p74 = por %p72, %p73
      %p75 = scmp.ne.s32.totalorder %s63, %s64
      %p76 = scmp.eq.s32.totalorder %s19, 1
      %p77 = por %p75, %p76
      %p79 = scmp.ne.s32.totalorder %s64, %s78
      %p80 = scmp.eq.s32.totalorder %s19, 0
      %p81 = por %p79, %p80
      %s83 = sadd.s32 %s82, 1
      %p86 = scmp.eq.s32.totalorder %s13, 1
      %p87 = scmp.ne.s32.totalorder %s82, %s84
      %p88 = scmp.eq.s32.totalorder %s13, 0
      %p89 = por %p87, %p88
      %p90 = scmp.ne.s32.totalorder %s82, %s84
      %p91 = scmp.eq.s32.totalorder %s18, 1
      %p92 = por %p90, %p91
      %p93 = scmp.ne.s32.totalorder %s84, %s85
      %p94 = scmp.eq.s32.totalorder %s18, 0
      %p95 = por %p93, %p94
      %p96 = scmp.ne.s32.totalorder %s84, %s85
      %p97 = scmp.eq.s32.totalorder %s19, 1
      %p98 = por %p96, %p97
      %p100 = scmp.ne.s32.totalorder %s85, %s99
      %p101 = scmp.eq.s32.totalorder %s19, 0
      %p102 = por %p100, %p101
      %s103 = ssub.s32 %s20, %s32
      %p104 = scmp.eq.s32.totalorder %s103, 0
      %s106 = sadd.s32 %s105, 1
      %s107 = scalar_select %p104, %s105, %s106
      %p110 = pneg %p104
      %p111 = scmp.eq.s32.totalorder %s13, 1
      %p112 = por %p110, %p111
      %p113 = scmp.ne.s32.totalorder %s105, %s108
      %p114 = scmp.eq.s32.totalorder %s13, 0
      %p115 = por %p113, %p114
      %p116 = scmp.ne.s32.totalorder %s105, %s108
      %p117 = scmp.eq.s32.totalorder %s18, 1
      %p118 = por %p116, %p117
      %p119 = scmp.ne.s32.totalorder %s108, %s109
      %p120 = scmp.eq.s32.totalorder %s18, 0
      %p121 = por %p119, %p120
      %p122 = scmp.ne.s32.totalorder %s108, %s109
      %p123 = scmp.eq.s32.totalorder %s19, 1
      %p124 = por %p122, %p123
      %p126 = scmp.ne.s32.totalorder %s109, %s125
      %p127 = scmp.eq.s32.totalorder %s19, 0
      %p128 = por %p126, %p127
      %s129 = ssub.s32 %s21, %s28
      %s130 = ssub.s32 %s20, %s32
      %s131 = sor.u32 %s129, %s130
      %p132 = scmp.eq.s32.totalorder %s131, 0
      %s134 = sadd.s32 %s133, 1
      %s135 = scalar_select %p132, %s133, %s134
      %p138 = pneg %p132
      %p139 = scmp.eq.s32.totalorder %s13, 1
      %p140 = por %p138, %p139
      %p141 = scmp.ne.s32.totalorder %s133, %s136
      %p142 = scmp.eq.s32.totalorder %s13, 0
      %p143 = por %p141, %p142
      %p144 = scmp.ne.s32.totalorder %s133, %s136
      %p145 = scmp.eq.s32.totalorder %s18, 1
      %p146 = por %p144, %p145
      %p147 = scmp.ne.s32.totalorder %s136, %s137
      %p148 = scmp.eq.s32.totalorder %s18, 0
      %p149 = por %p147, %p148
      %p150 = scmp.ne.s32.totalorder %s136, %s137
      %p151 = scmp.eq.s32.totalorder %s19, 1
      %p152 = por %p150, %p151
      %p154 = scmp.ne.s32.totalorder %s137, %s153
      %p155 = scmp.eq.s32.totalorder %s19, 0
      %p156 = por %p154, %p155
      %p157 = scmp.le.s32.totalorder 1, %s13
      %p158 = scmp.lt.s32.totalorder %s13, 3
      %p159 = pnand %p157, %p158
      %p160 = pneg %p159
      // Predicated region
      $region9: #{tpu_custom_call.1} parent=5 // pred_check
        _
      $region10: #{tpu_custom_call.1} parent=5 // pred_check_branch
        %162 = sbr.rel (%p159) target = $region12
      $region11: #{tpu_custom_call.1} parent=5 // pred_region
        %s163 = ssub.s32 %s13, 1
        // Predicated region
        $region13: #{tpu_custom_call.1} parent=11 // pred_check
          %p164 = pneg %p74
        $region14: #{tpu_custom_call.1} parent=11 // pred_check_branch
          %166 = sbr.rel (%p164) target = $region16
        $region15: #{tpu_custom_call.1} parent=11 // pred_region
          _
        $region16: #{tpu_custom_call.1} parent=11 // pred_fallthru
          _
        // Predicated region
        $region17: #{tpu_custom_call.1} parent=11 // pred_check
          %p167 = pneg %p95
        $region18: #{tpu_custom_call.1} parent=11 // pred_check_branch
          %169 = sbr.rel (%p167) target = $region20
        $region19: #{tpu_custom_call.1} parent=11 // pred_region
          _
        $region20: #{tpu_custom_call.1} parent=11 // pred_fallthru
          _
        // Predicated region
        $region21: #{tpu_custom_call.1} parent=11 // pred_check
          %p170 = pneg %p121
        $region22: #{tpu_custom_call.1} parent=11 // pred_check_branch
          %172 = sbr.rel (%p170) target = $region24
        $region23: #{tpu_custom_call.1} parent=11 // pred_region
          %s173 = smul.u32 2, %s22
          %p174 = scmp.lt.s32.totalorder %s173, 1
          %s175 = scalar_select %p174, %s173, 1
          %s176 = smul.addr %s175, 8
          %s177 = scalar_lea.vmem %s3, %s176
          %s178 = smul.u32 2, %s22
        $region24: #{tpu_custom_call.1} parent=11 // pred_fallthru
          _
      $region12: #{tpu_custom_call.1} parent=5 // pred_fallthru
        _
      %p179 = scmp.lt.s32.totalorder %s13, 2
      // Predicated region
      $region25: #{tpu_custom_call.1} parent=5 // pred_check
        %p180 = pneg %p179
      $region26: #{tpu_custom_call.1} parent=5 // pred_check_branch
        %182 = sbr.rel (%p180) target = $region28
      $region27: #{tpu_custom_call.1} parent=5 // pred_region
        // Predicated region
        $region29: #{tpu_custom_call.1} parent=27 // pred_check
          %p183 = pneg %p47
        $region30: #{tpu_custom_call.1} parent=27 // pred_check_branch
          %185 = sbr.rel (%p183) target = $region32
        $region31: #{tpu_custom_call.1} parent=27 // pred_region
          %s186 = smul.u32 2, %s20
          %p187 = scmp.lt.s32.totalorder %s21, 1
          %s188 = scalar_select %p187, %s21, 1
          %p189 = scmp.lt.s32.totalorder %s186, 1
          %s190 = scalar_select %p189, %s186, 1
          %s191 = smul.addr %s188, 2
          %s192 = sadd.s32 %s190, %s191
          %s193 = smul.addr %s192, 4
          %s194 = scalar_lea.vmem %s0, %s193
          %s195 = smul.u32 2, %s20
        $region32: #{tpu_custom_call.1} parent=27 // pred_fallthru
          _
      $region28: #{tpu_custom_call.1} parent=5 // pred_fallthru
        _
      %p196 = scmp.le.s32.totalorder 1, %s13
      %p197 = scmp.lt.s32.totalorder %s13, 3
      %p198 = pnand %p196, %p197
      %p199 = pneg %p198
      // Predicated region
      $region33: #{tpu_custom_call.1} parent=5 // pred_check
        _
      $region34: #{tpu_custom_call.1} parent=5 // pred_check_branch
        %201 = sbr.rel (%p198) target = $region36
      $region35: #{tpu_custom_call.1} parent=5 // pred_region
        %s202 = ssub.s32 %s13, 1
        %s203 = smul.u32 2, %s22
        %p204 = scmp.lt.s32.totalorder %s23, 1
        %s205 = scalar_select %p204, %s23, 1
        %p206 = scmp.lt.s32.totalorder %s203, 1
        %s207 = scalar_select %p206, %s203, 1
        %s208 = smul.addr %s205, 2
        %s209 = sadd.s32 %s207, %s208
        %s210 = smul.addr %s209, 4
        %s211 = scalar_lea.vmem %s0, %s210
        %p212 = pneg %p53
        %p213 = pneg %p50
        %p214 = pneg %p74
        %p215 = pneg %p71
        %p216 = pneg %p95
        %p217 = pneg %p92
        %s218 = smul.u32 2, %s22
        %p219 = scmp.lt.s32.totalorder %s218, 1
        %s220 = scalar_select %p219, %s218, 1
        %s221 = smul.addr %s220, 8
        %s222 = scalar_lea.vmem %s3, %s221
        %p223 = pneg %p121
        %p224 = pneg %p118
        %p225 = pneg %p149
        %p226 = pneg %p146
        %s227 = sand.u32 %s136, 1
        %s228 = scalar_lea.sflag [#allocation3], %s227
        %s229 = sand.u32 %s136, 1
        %s230 = smul.addr %s229, 16
        %s231 = scalar_lea.vmem [#allocation2], %s230
        %s232 = smul.u32 2, %s22
        %p233 = scmp.lt.s32.totalorder %s23, 1
        %s234 = scalar_select %p233, %s23, 1
        %p235 = scmp.lt.s32.totalorder %s232, 1
        %s236 = scalar_select %p235, %s232, 1
        %s237 = smul.addr %s234, 2
        %s238 = sadd.s32 %s236, %s237
        %s239 = smul.addr %s238, 4
        %s240 = scalar_lea.vmem %s0, %s239
        %s241 = smul.u32 2, %s22
        %s242 = smul.u32 2, %s22
        %p243 = scmp.lt.s32.totalorder %s242, 1
        %s244 = scalar_select %p243, %s242, 1
        %s245 = smul.addr %s244, 8
        %s246 = scalar_lea.vmem %s3, %s245
        %s247 = smul.u32 2, %s22
        %s248 = smul.u32 2, %s22
        %v250 = vld [vmem:[%s240] sm:$0xf]
        %v251 = vld [vmem:[%s240 + $0x4] sm:$0xf]
        %v252 = vld [vmem:[%s1] sm:$0xf]
        %v253 = vld [vmem:[%s1 + $0x4] sm:$0xf]
        %v254 = vld [vmem:[%s1 + $0x8] sm:$0xf]
        %v255 = vld [vmem:[%s1 + $0xc] sm:$0xf]
        %v256 = vld [vmem:[%s1 + $0x10] sm:$0xf]
        %v257 = vld [vmem:[%s1 + $0x14] sm:$0xf]
        %v258 = vld [vmem:[%s1 + $0x18] sm:$0xf]
        %v259 = vld [vmem:[%s1 + $0x1c] sm:$0xf]
        %v260 = vld [vmem:[%s1 + $0x20] sm:$0xf]
        %v261 = vld [vmem:[%s1 + $0x24] sm:$0xf]
        %v262 = vld [vmem:[%s1 + $0x28] sm:$0xf]
        %v263 = vld [vmem:[%s1 + $0x2c] sm:$0xf]
        %v264 = vld [vmem:[%s1 + $0x30] sm:$0xf]
        %v265 = vld [vmem:[%s1 + $0x34] sm:$0xf]
        %v266 = vld [vmem:[%s1 + $0x38] sm:$0xf]
        %v267 = vld [vmem:[%s1 + $0x3c] sm:$0xf]
        %v268 = vld [vmem:[%s2] sm:$0x1]
        %v270 = vlaneseq
        %v271 = vshrl.u32 %v270, 7
        %v272 = vsub.s32 0, %v271
        %v273 = vrot.slane %v268, %v272
        %v277 = vunpack.c.l.b16 %v250
        %v278 = vunpack.c.l.b16 %v251
        %v279 = vpack.c.b16 %v278, %v277
        %v297 = vunpack.c.l.b16 %v252
        %v298 = vunpack.c.l.b16 %v253
        %v299 = vunpack.c.l.b16 %v254
        %v300 = vunpack.c.l.b16 %v255
        %v301 = vunpack.c.l.b16 %v256
        %v302 = vunpack.c.l.b16 %v257
        %v303 = vunpack.c.l.b16 %v258
        %v304 = vunpack.c.l.b16 %v259
        %v305 = vunpack.c.l.b16 %v260
        %v306 = vunpack.c.l.b16 %v261
        %v307 = vunpack.c.l.b16 %v262
        %v308 = vunpack.c.l.b16 %v263
        %v309 = vunpack.c.l.b16 %v264
        %v310 = vunpack.c.l.b16 %v265
        %v311 = vunpack.c.l.b16 %v266
        %v312 = vunpack.c.l.b16 %v267
        %v313 = vpack.c.b16 %v298, %v297
        %v314 = vpack.c.b16 %v300, %v299
        %v315 = vpack.c.b16 %v302, %v301
        %v316 = vpack.c.b16 %v304, %v303
        %v317 = vpack.c.b16 %v306, %v305
        %v318 = vpack.c.b16 %v308, %v307
        %v319 = vpack.c.b16 %v310, %v309
        %v320 = vpack.c.b16 %v312, %v311
        %329 = vmatprep.subr.bf16.mxu0 0
        %330 = vmatpush1.bf16.msra.mxu0 %v320
        %331 = vmatprep.subr.bf16.mxu0 0
        %332 = vmatpush1.bf16.msra.mxu0 %v319
        %333 = vmatprep.subr.bf16.mxu0 0
        %334 = vmatpush1.bf16.msra.mxu0 %v318
        %335 = vmatprep.subr.bf16.mxu0 0
        %336 = vmatpush1.bf16.msra.mxu0 %v317
        %337 = vmatprep.subr.bf16.mxu0 0
        %338 = vmatpush1.bf16.msra.mxu0 %v316
        %339 = vmatprep.subr.bf16.mxu0 0
        %340 = vmatpush1.bf16.msra.mxu0 %v315
        %341 = vmatprep.subr.bf16.mxu0 0
        %342 = vmatpush1.bf16.msra.mxu0 %v314
        %343 = vmatprep.subr.bf16.mxu0 0
        %344 = vmatpush1.bf16.msra.mxu0 %v313
        %345 = vmatprep.subr.bf16.mxu0 0
        %346 = vmatpush2.bf16.msra.mxu0 0
        %347 = vmatprep.subr.bf16.mxu0 0
        %348 = vmatpush2.bf16.msra.mxu0 0
        %349 = vmatprep.subr.bf16.mxu0 0
        %350 = vmatpush2.bf16.msra.mxu0 0
        %351 = vmatprep.subr.bf16.mxu0 0
        %352 = vmatpush2.bf16.msra.mxu0 0
        %353 = vmatprep.subr.bf16.mxu0 0
        %354 = vmatpush2.bf16.msra.mxu0 0
        %355 = vmatprep.subr.bf16.mxu0 0
        %356 = vmatpush2.bf16.msra.mxu0 0
        %357 = vmatprep.subr.bf16.mxu0 0
        %358 = vmatpush2.bf16.msra.mxu0 0
        %359 = vmatprep.subr.bf16.mxu0 0
        %360 = vmatpush2.bf16.msra.mxu0 0
        %361 = vmatprep.mubr.bf16.mxu0 0
        %362 = vmatmul.mubr.bf16.gmra.mxu0 %v279
        %v363 = vpop.f32.mrf.mxu0
        %v364 = vadd.f32 %v273, %v363
        %v365 = vpop.f32.mrf.mxu0
        %v366 = vpop.f32.mrf.mxu0
        %v367 = vadd.f32 %v273, %v366
        %v368 = vpop.f32.mrf.mxu0
        %369 = vdwg.mxu0
        %vm370 = vcmp.ge.f32.partialorder %v364, 0.0
        %vm371 = vcmp.ge.f32.partialorder %v367, 0.0
        %v372 = vmul.f32 %v364, 0.2
        %v373 = vmul.f32 %v367, 0.2
        %v374 = vsel %vm370, %v364, %v372
        %v375 = vsel %vm371, %v367, %v373
        %v376 = vld [vmem:[%s246] sm:$0xff]
        %v377 = vld [vmem:[%s246 + $0x8] sm:$0xff]
        %v378 = vadd.f32 %v374, %v376
        %v379 = vadd.f32 %v375, %v377
        %vm380 = vcmask 261120
        %381 = vst.msk [vmem:[%s231] sm:$0xff] %vm380, %v378
        %382 = vst.msk [vmem:[%s231 + $0x8] sm:$0xff] %vm380, %v379
        %s383 = sand.u32 %s136, 1
        %s384 = scalar_lea.sflag [#allocation3], %s383
        %s385 = sand.u32 %s136, 1
        %s386 = smul.addr %s385, 16
        %s387 = scalar_lea.vmem [#allocation2], %s386
        // Predicated region
        $region37: #{tpu_custom_call.1} parent=35 // pred_check
          %p388 = pneg %p146
        $region38: #{tpu_custom_call.1} parent=35 // pred_check_branch
          %390 = sbr.rel (%p388) target = $region40
        $region39: #{tpu_custom_call.1} parent=35 // pred_region
          %s391 = smul.u32 2, %s22
          %s393 = ssub.s32 256, 256
          %394 = vsyncadd %s384, %s393
          %s395 = smul.addr %s23, 2
          %s396 = sadd.s32 %s391, %s395
          %s397 = smul.addr %s396, 128
          %s398 = scalar_lea.hbm %s4, %s397
          %s399 = sshll.u32 %s387, 4
          %s400 = int_to_ptr.vmem [resolvable:$true] %s399
          %405 = dma.vmem_to_hbm [thread:$0]  %s400, 256, %s398, %s384, 128, 128, 8
        $region40: #{tpu_custom_call.1} parent=35 // pred_fallthru
          _
      $region36: #{tpu_custom_call.1} parent=5 // pred_fallthru
        _
      %p406 = scmp.le.s32.totalorder 2, %s13
      // Predicated region
      $region41: #{tpu_custom_call.1} parent=5 // pred_check
        %p407 = pneg %p406
      $region42: #{tpu_custom_call.1} parent=5 // pred_check_branch
        %409 = sbr.rel (%p407) target = $region44
      $region43: #{tpu_custom_call.1} parent=5 // pred_region
        %s410 = ssub.s32 %s13, 2
        // Predicated region
        $region45: #{tpu_custom_call.1} parent=43 // pred_check
          %p411 = pneg %p152
        $region46: #{tpu_custom_call.1} parent=43 // pred_check_branch
          %413 = sbr.rel (%p411) target = $region48
        $region47: #{tpu_custom_call.1} parent=43 // pred_region
          %s414 = sand.u32 %s137, 1
          %s415 = scalar_lea.sflag [#allocation3], %s414
          %s416 = sand.u32 %s137, 1
          %s417 = smul.addr %s416, 16
          %s418 = scalar_lea.vmem [#allocation2], %s417
          %419 = dma.done %s415, 256
        $region48: #{tpu_custom_call.1} parent=43 // pred_fallthru
          _
      $region44: #{tpu_custom_call.1} parent=5 // pred_fallthru
        _
    $region6: #{tpu_custom_call.1} parent=1 // loop_footer
      %s17 = sadd.s32 1, %s13
    $region7: #{tpu_custom_call.1} parent=1 // loop_footer_branch
      %12 = sbr.rel target = $region3
    $region8: #{tpu_custom_call.1} parent=1 // loop_exit
      _
    %420 = vsyncpa [#allocation3], 1
    %s421 = scalar_lea.sflag [#allocation3], 1
    %422 = vsyncpa %s421, 1

</llo_original>
